<compile_context>
chip_gen: v7x
topology: tpu7x:2x2x1
jax: 0.10.0
libtpu: 0.0.40
codegen_flags: <defaults>
</compile_context>

<pallas_src>
import functools

import numpy as np
import jax
import jax.numpy as jnp
from jax import lax
from jax.experimental import pallas as pl
from jax.experimental.pallas import tpu as pltpu

LANE = 128
SUB = 8


def _mg_kernel(rtol_ref, Gtm_ref, Fm_ref, ARt_ref, Bc_ref, CPt_ref, X0_ref,
               *rest, niters0, niters1, maxiter, use_rel_error, bsp, hp_pad):
    # rest layout (inputs..., outputs..., scratch...):
    #   relative_error    : Xsol, inv_xn        | hist | x, act
    #   relative_residual : At,   B,   inv_bn   | hist | x, act
    if use_rel_error:
        Xsol_ref, invxn_ref, hist_ref, x_ref, act_ref = rest
    else:
        At_ref, B_ref, invbn_ref, hist_ref, x_ref, act_ref = rest

    rtol = rtol_ref[0]                       # SMEM scalar
    Gtm = Gtm_ref[...]                       # (np_, np_)  (G^m0)^T, fused smoother
    Fm = Fm_ref[...]                         # (bsp, np_)  fused smoother constant
    col = lax.broadcasted_iota(jnp.int32, (bsp, hp_pad), 1)   # hoisted once

    if use_rel_error:
        Xsol = Xsol_ref[...]
        invxn = invxn_ref[...]               # (bsp, 1)

        def criterion(X):
            E = Xsol - X
            return jnp.sqrt(jnp.sum(E * E, axis=1, keepdims=True)) * invxn
    else:
        At = At_ref[...]                     # (np_, np_)  A^T (only mode that needs it)
        B = B_ref[...]                       # (bsp, np_)
        invbn = invbn_ref[...]               # (bsp, 1)

        def criterion(X):
            r = B - jnp.dot(X, At, preferred_element_type=jnp.float32)
            return jnp.sqrt(jnp.sum(r * r, axis=1, keepdims=True)) * invbn

    def smooth(X):                           # m0 Jacobi sweeps == one matmul
        if niters0 == 0:
            return X
        return jnp.dot(X, Gtm, preferred_element_type=jnp.float32) + Fm

    # ---------------- init (history row 0, active counter) -----------------
    X0 = X0_ref[...]
    x_ref[...] = X0
    crit0 = criterion(X0)                    # (bsp, 1)
    hist_ref[...] = jnp.where(col == 0, crit0, 0.0)
    act_ref[0] = jnp.sum((crit0 > rtol).astype(jnp.int32))

    # ---------------- maxiter V-cycles with true early exit ----------------
    def body(i, carry):
        @pl.when(act_ref[0] > 0)
        def _():
            X = smooth(x_ref[...])                                 # pre-smooth
            if niters1 > 0:
                # fused restriction:       Rc = R (b - A x)   (row form)
                Rc = Bc_ref[...] - jnp.dot(X, ARt_ref[...],
                                           preferred_element_type=jnp.float32)
                # fused coarse solve + prolongation:  x += P * jacobi(A_c, Rc, 0)
                X = X + jnp.dot(Rc, CPt_ref[...],
                                preferred_element_type=jnp.float32)
            X = smooth(X)                                          # post-smooth
            crit = criterion(X)
            x_ref[...] = X
            hist_ref[...] = jnp.where(col == (i + 1), crit, hist_ref[...])
            act_ref[0] = jnp.sum((crit > rtol).astype(jnp.int32))
        return carry

    lax.fori_loop(0, maxiter, body, 0)


def _pad2(M, r, c):
    out = np.zeros((r, c), np.float32)
    out[:M.shape[0], :M.shape[1]] = M
    return out


def _ceil_to(x, m):
    return ((x + m - 1) // m) * m


def multigrid_forward(tau, theta, *, omega, niters, criterion):
    """JAX/Pallas equivalent of MultigridJit.forward -> history (bs, maxiter+1)."""
    # ---- one-time host-side algebraic setup (float64 glue, not jitted) ----
    # NOTE: the reference module uses tau['A'][:1], i.e. a single A shared by
    # the whole batch; the kernel therefore also ignores A[1:].
    A = np.asarray(tau['A'], np.float64)[0]          # (n, n)
    b = np.asarray(tau['b'], np.float64)             # (bs, n)
    x_sol = np.asarray(tau['x_sol'], np.float64)     # (bs, n)
    maxiter = int(np.asarray(tau['maxiter']).max())
    rtol = np.asarray(tau['rtol'], np.float32).reshape(1)
    bs, n = b.shape
    nc = n // 2
    m0, m1 = int(niters[0]), int(niters[1])
    use_rel_error = (criterion == 'relative_error')
    X0 = np.asarray(theta, np.float64).reshape(bs, n)

    # Fine-grid fused smoother:  x_m = G^m0 x + (sum_k G^k) * (w D^-1 b)
    wdinv = omega / np.diag(A)
    G = np.eye(n) - wdinv[:, None] * A
    S = np.zeros((n, n))
    Gk = np.eye(n)
    for _ in range(m0):
        S += Gk
        Gk = Gk @ G
    Gm = Gk                                           # G^m0
    Fm = (b * wdinv[None, :]) @ S.T                   # (bs, n)

    # Coarse grid operators (make_R_and_P) + fused coarse solve / prolongation.
    R = np.abs(A[1::2, :]) / 4.0                      # (nc, n)
    P = 2.0 * R.T                                     # (n, nc)
    A_c = R @ A @ P
    wdinv_c = omega / np.diag(A_c)
    G_c = np.eye(nc) - wdinv_c[:, None] * A_c
    S_c = np.zeros((nc, nc))
    Gck = np.eye(nc)
    for _ in range(m1):
        S_c += Gck
        Gck = Gck @ G_c
    CPt = wdinv_c[:, None] * (S_c.T @ P.T)            # (nc, n)  coarse-solve+prolong
    ARt = (R @ A).T                                   # (n, nc)  fused restriction
    Bc = b @ R.T                                      # (bs, nc)

    # ---- padding (lane = 128, sublane = 8) ----
    np_ = _ceil_to(n, LANE)
    ncp = _ceil_to(nc, LANE)
    bsp = _ceil_to(bs, SUB)
    hp_pad = _ceil_to(maxiter + 1, LANE)              # lane-dense history output

    args = [jnp.asarray(rtol),                              # SMEM scalar
            jnp.asarray(_pad2(Gm.T, np_, np_)),              # fused smoother matrix
            jnp.asarray(_pad2(Fm, bsp, np_)),
            jnp.asarray(_pad2(ARt, np_, ncp)),
            jnp.asarray(_pad2(Bc, bsp, ncp)),
            jnp.asarray(_pad2(CPt, ncp, np_)),
            jnp.asarray(_pad2(X0, bsp, np_))]
    if use_rel_error:                                        # A^T / B / inv_bn never DMA'd
        inv_xn = (1.0 / np.linalg.norm(x_sol, axis=1)).reshape(bs, 1)
        args += [jnp.asarray(_pad2(x_sol, bsp, np_)),
                 jnp.asarray(_pad2(inv_xn, bsp, 1))]
    else:                                                    # Xsol / inv_xn never DMA'd
        inv_bn = (1.0 / np.linalg.norm(b, axis=1)).reshape(bs, 1)
        args += [jnp.asarray(_pad2(A.T, np_, np_)),
                 jnp.asarray(_pad2(b, bsp, np_)),
                 jnp.asarray(_pad2(inv_bn, bsp, 1))]

    # ---- size the scoped-VMEM limit explicitly (mandatory for non-toy n) ----
    in_bytes = sum(int(np.prod(a.shape)) * 4 for a in args[1:])
    out_bytes = bsp * hp_pad * 4
    scratch_bytes = bsp * np_ * 4
    needed = 2 * (in_bytes + out_bytes) + scratch_bytes + (2 << 20)
    vmem_limit = int(min(max(needed, 4 << 20), 64 << 20))    # 64 MiB = v7x per-TC

    kernel = functools.partial(
        _mg_kernel, niters0=m0, niters1=m1, maxiter=maxiter,
        use_rel_error=use_rel_error, bsp=bsp, hp_pad=hp_pad)

    vmem = pl.BlockSpec(memory_space=pltpu.MemorySpace.VMEM)
    smem = pl.BlockSpec(memory_space=pltpu.MemorySpace.SMEM)

    hist = pl.pallas_call(
        kernel,
        out_shape=jax.ShapeDtypeStruct((bsp, hp_pad), jnp.float32),
        in_specs=[smem] + [vmem] * (len(args) - 1),
        out_specs=vmem,
        scratch_shapes=[pltpu.VMEM((bsp, np_), jnp.float32),   # current x
                        pltpu.SMEM((1,), jnp.int32)],          # "any(crit>rtol)" counter
        compiler_params=pltpu.CompilerParams(vmem_limit_bytes=vmem_limit),
    )(*args)

    return hist[:bs, :maxiter + 1]                    # (bs, maxiter + 1)


def multigrid_reference(tau, theta, *, omega, niters, criterion):
    """Pure numpy replica of the PyTorch forward (step-by-step G-form Jacobi)."""
    A = np.asarray(tau['A'], np.float32)[0]
    b = np.asarray(tau['b'], np.float32)
    x_sol = np.asarray(tau['x_sol'], np.float32)
    maxiter = int(np.asarray(tau['maxiter']).max())
    rtol = float(np.asarray(tau['rtol']))
    bs, n = b.shape

    def jacobi(Amat, Bm, X, m):
        dinv = 1.0 / np.diag(Amat)
        Gm = np.eye(Amat.shape[0], dtype=np.float32) - omega * dinv[:, None] * Amat
        Fm = omega * dinv[:, None] * Bm
        for _ in range(m):
            X = Gm @ X + Fm
        return X

    B = b.T
    X = np.asarray(theta, np.float32).reshape(bs, n).T.copy()
    Xsol = x_sol.T
    R = np.abs(A[1::2, :]) / 4.0
    P = 2.0 * R.T
    A_c = R @ A @ P
    xnorm = np.linalg.norm(Xsol, axis=0)
    bnorm = np.linalg.norm(B, axis=0)

    def crit_of(Xc):
        if criterion == 'relative_error':
            return np.linalg.norm(Xsol - Xc, axis=0) / xnorm
        return np.linalg.norm(B - A @ Xc, axis=0) / bnorm

    history = np.zeros((bs, maxiter + 1), np.float32)
    c = crit_of(X)
    history[:, 0] = c
    i = 0
    while i < maxiter and np.any(c > rtol):
        X = jacobi(A, B, X, niters[0])
        rc = R @ (B - A @ X)
        ec = jacobi(A_c, rc, np.zeros_like(rc), niters[1])
        X = X + P @ ec
        X = jacobi(A, B, X, niters[0])
        c = crit_of(X)
        i += 1
        history[:, i] = c
    return history


if __name__ == "__main__":
    omega = 2.0 / 3.0

    def poisson(n):
        return (2.0 * np.eye(n, dtype=np.float32)
                - np.eye(n, k=1, dtype=np.float32)
                - np.eye(n, k=-1, dtype=np.float32))

    def make_case(key, bs, n):
        kb, kt = jax.random.split(key)
        A1 = poisson(n)
        A = np.broadcast_to(A1, (bs, n, n)).copy()
        b = np.asarray(jax.random.normal(kb, (bs, n), jnp.float32))
        x_sol = np.linalg.solve(A1.astype(np.float64), b.T.astype(np.float64)).T
        theta = np.asarray(jax.random.normal(kt, (bs, n), jnp.float32))
        return A, b, x_sol.astype(np.float32), theta

    A, b, x_sol, theta = make_case(jax.random.PRNGKey(0), bs=2, n=16)
    A3, b3, x3, t3 = make_case(jax.random.PRNGKey(1), bs=5, n=32)

    # (A, b, x_sol, theta, maxiter, criterion, rtol, niters)
    cases = [
        # relative_error, tiny rtol -> full trajectory, no early exit
        (A, b, x_sol, theta, 8, 'relative_error', 1e-20, [2, 2]),
        # relative_residual, loose rtol -> exercises the true early-exit path
        (A, b, x_sol, theta, 8, 'relative_residual', 1e-2, [2, 2]),
        # odd batch size + larger n (padding), full trajectory
        (A3, b3, x3, t3, 10, 'relative_error', 1e-20, [2, 2]),
        # different smoothing counts -> exercises the general m0/m1 fusion
        (A, b, x_sol, theta, 6, 'relative_error', 1e-20, [1, 3]),
    ]

    for (Ac, bc, xc, tc, maxiter, crit_name, rtol_val, niters) in cases:
        tau = {'A': Ac, 'b': bc, 'x_sol': xc,
               'maxiter': np.asarray(maxiter, np.int32),
               'rtol': np.asarray(rtol_val, np.float32)}
        hist = multigrid_forward(tau, tc, omega=omega, niters=niters,
                                 criterion=crit_name)
        hist = jax.block_until_ready(hist)
        ref = multigrid_reference(tau, tc, omega=omega, niters=niters,
                                  criterion=crit_name)
        np.testing.assert_allclose(np.asarray(hist), ref, rtol=5e-3, atol=2e-4)

    print("KERNEL_OK")
</pallas_src>

<mosaic_0001>
module attributes {stable_mosaic.version = 11 : i64} {
  func.func @_mg_kernel(%arg0: memref<1xf32, #tpu.memory_space<smem>>, %arg1: memref<128x128xf32, #tpu.memory_space<vmem>>, %arg2: memref<8x128xf32, #tpu.memory_space<vmem>>, %arg3: memref<128x128xf32, #tpu.memory_space<vmem>>, %arg4: memref<8x128xf32, #tpu.memory_space<vmem>>, %arg5: memref<128x128xf32, #tpu.memory_space<vmem>>, %arg6: memref<8x128xf32, #tpu.memory_space<vmem>>, %arg7: memref<8x128xf32, #tpu.memory_space<vmem>>, %arg8: memref<8x1xf32, #tpu.memory_space<vmem>>, %arg9: memref<8x128xf32, #tpu.memory_space<vmem>>, %arg10: memref<8x128xf32, #tpu.memory_space<vmem>>, %arg11: memref<1xi32, #tpu.memory_space<smem>>) attributes {dimension_semantics = [], scalar_prefetch = 0 : i64, scratch_operands = 2 : i64, tpu.core_type = #tpu.core_type<tc>} {
    %c0 = arith.constant 0 : index
    %0 = memref.load %arg0[%c0] : memref<1xf32, #tpu.memory_space<smem>>
    %c0_0 = arith.constant 0 : index
    %c0_1 = arith.constant 0 : index
    %1 = vector.load %arg1[%c0_0, %c0_1] : memref<128x128xf32, #tpu.memory_space<vmem>>, vector<128x128xf32>
    %c0_2 = arith.constant 0 : index
    %c0_3 = arith.constant 0 : index
    %2 = vector.load %arg2[%c0_2, %c0_3] : memref<8x128xf32, #tpu.memory_space<vmem>>, vector<8x128xf32>
    %3 = tpu.iota {dimensions = array<i32: 1>} : vector<8x128xi32>
    %c0_4 = arith.constant 0 : index
    %c0_5 = arith.constant 0 : index
    %4 = vector.load %arg7[%c0_4, %c0_5] : memref<8x128xf32, #tpu.memory_space<vmem>>, vector<8x128xf32>
    %c0_6 = arith.constant 0 : index
    %c0_7 = arith.constant 0 : index
    %5 = vector.load %arg8[%c0_6, %c0_7] : memref<8x1xf32, #tpu.memory_space<vmem>>, vector<8x1xf32>
    %c0_8 = arith.constant 0 : index
    %c0_9 = arith.constant 0 : index
    %6 = vector.load %arg6[%c0_8, %c0_9] : memref<8x128xf32, #tpu.memory_space<vmem>>, vector<8x128xf32>
    %c0_10 = arith.constant 0 : index
    %c0_11 = arith.constant 0 : index
    %7 = vector.load %arg10[%c0_10, %c0_11] : memref<8x128xf32, #tpu.memory_space<vmem>>, vector<8x128xf32>
    tpu.vector_store %arg10[%c0_10, %c0_11], %6 {strides = array<i32>} : memref<8x128xf32, #tpu.memory_space<vmem>>, vector<8x128xf32>,
    %8 = arith.subf %4, %6 : vector<8x128xf32>
    %9 = arith.mulf %8, %8 : vector<8x128xf32>
    %cst = arith.constant dense<0.000000e+00> : vector<8xf32>
    %10 = vector.multi_reduction <add>, %9, %cst [1] : vector<8x128xf32> to vector<8xf32>
    %11 = vector.shape_cast %10 : vector<8xf32> to vector<8x1xf32>
    %12 = math.sqrt %11 : vector<8x1xf32>
    %13 = arith.mulf %12, %5 : vector<8x1xf32>
    %c0_i32 = arith.constant 0 : i32
    %14 = vector.broadcast %c0_i32 : i32 to vector<8x128xi32>
    %15 = arith.cmpi eq, %3, %14 : vector<8x128xi32>
    %cst_12 = arith.constant 0.000000e+00 : f32
    %16 = vector.shape_cast %13 : vector<8x1xf32> to vector<8x1xf32>
    %17 = vector.broadcast %16 : vector<8x1xf32> to vector<8x128xf32>
    %18 = vector.broadcast %cst_12 : f32 to vector<8x128xf32>
    %19 = arith.select %15, %17, %18 : vector<8x128xi1>, vector<8x128xf32>
    %c0_13 = arith.constant 0 : index
    %c0_14 = arith.constant 0 : index
    %20 = vector.load %arg9[%c0_13, %c0_14] : memref<8x128xf32, #tpu.memory_space<vmem>>, vector<8x128xf32>
    tpu.vector_store %arg9[%c0_13, %c0_14], %19 {strides = array<i32>} : memref<8x128xf32, #tpu.memory_space<vmem>>, vector<8x128xf32>,
    %21 = vector.broadcast %0 : f32 to vector<8x1xf32>
    %22 = arith.cmpf ogt, %13, %21 : vector<8x1xf32>
    %23 = arith.extui %22 : vector<8x1xi1> to vector<8x1xi32>
    %24 = vector.shape_cast %23 : vector<8x1xi32> to vector<1x8x1xi32>
    %cst_15 = arith.constant dense<0> : vector<1xi32>
    %25 = vector.multi_reduction <add>, %24, %cst_15 [1, 2] : vector<1x8x1xi32> to vector<1xi32>
    %26 = vector.shape_cast %25 : vector<1xi32> to vector<1x1x1xi32>
    %27 = vector.extract %26[0, 0, 0] : i32 from vector<1x1x1xi32>
    %c0_16 = arith.constant 0 : index
    %28 = memref.load %arg11[%c0_16] : memref<1xi32, #tpu.memory_space<smem>>
    memref.store %27, %arg11[%c0_16] : memref<1xi32, #tpu.memory_space<smem>>
    %c0_i32_17 = arith.constant 0 : i32
    %c8_i32 = arith.constant 8 : i32
    %29 = arith.addi %c0_i32_17, %c8_i32 : i32
    %c1_i32 = arith.constant 1 : i32
    scf.for %arg12 = %c0_i32_17 to %29 step %c1_i32  : i32 {
      %c0_19 = arith.constant 0 : index
      %30 = memref.load %arg11[%c0_19] : memref<1xi32, #tpu.memory_space<smem>>
      %c0_i32_20 = arith.constant 0 : i32
      %31 = arith.cmpi sgt, %30, %c0_i32_20 : i32
      %32 = arith.extui %31 : i1 to i32
      %c0_i32_21 = arith.constant 0 : i32
      %33 = arith.cmpi ne, %32, %c0_i32_21 : i32
      scf.if %33 {
        %c0_22 = arith.constant 0 : index
        %c0_23 = arith.constant 0 : index
        %34 = vector.load %arg10[%c0_22, %c0_23] : memref<8x128xf32, #tpu.memory_space<vmem>>, vector<8x128xf32>
        %cst_24 = arith.constant dense<0.000000e+00> : vector<8x128xf32>
        %35 = tpu.matmul %34, %1, %cst_24 {dimension_numbers = #tpu.dot_dimension_numbers<[1], [0], [0], [1], [0, 0, 1, 1], [], []>} : vector<8x128xf32>, vector<128x128xf32>, vector<8x128xf32> -> vector<8x128xf32>
        %36 = arith.addf %35, %2 : vector<8x128xf32>
        %c0_25 = arith.constant 0 : index
        %c0_26 = arith.constant 0 : index
        %37 = vector.load %arg4[%c0_25, %c0_26] : memref<8x128xf32, #tpu.memory_space<vmem>>, vector<8x128xf32>
        %c0_27 = arith.constant 0 : index
        %c0_28 = arith.constant 0 : index
        %38 = vector.load %arg3[%c0_27, %c0_28] : memref<128x128xf32, #tpu.memory_space<vmem>>, vector<128x128xf32>
        %cst_29 = arith.constant dense<0.000000e+00> : vector<8x128xf32>
        %39 = tpu.matmul %36, %38, %cst_29 {dimension_numbers = #tpu.dot_dimension_numbers<[1], [0], [0], [1], [0, 0, 1, 1], [], []>} : vector<8x128xf32>, vector<128x128xf32>, vector<8x128xf32> -> vector<8x128xf32>
        %40 = arith.subf %37, %39 : vector<8x128xf32>
        %c0_30 = arith.constant 0 : index
        %c0_31 = arith.constant 0 : index
        %41 = vector.load %arg5[%c0_30, %c0_31] : memref<128x128xf32, #tpu.memory_space<vmem>>, vector<128x128xf32>
        %cst_32 = arith.constant dense<0.000000e+00> : vector<8x128xf32>
        %42 = tpu.matmul %40, %41, %cst_32 {dimension_numbers = #tpu.dot_dimension_numbers<[1], [0], [0], [1], [0, 0, 1, 1], [], []>} : vector<8x128xf32>, vector<128x128xf32>, vector<8x128xf32> -> vector<8x128xf32>
        %43 = arith.addf %36, %42 : vector<8x128xf32>
        %cst_33 = arith.constant dense<0.000000e+00> : vector<8x128xf32>
        %44 = tpu.matmul %43, %1, %cst_33 {dimension_numbers = #tpu.dot_dimension_numbers<[1], [0], [0], [1], [0, 0, 1, 1], [], []>} : vector<8x128xf32>, vector<128x128xf32>, vector<8x128xf32> -> vector<8x128xf32>
        %45 = arith.addf %44, %2 : vector<8x128xf32>
        %46 = arith.subf %4, %45 : vector<8x128xf32>
        %47 = arith.mulf %46, %46 : vector<8x128xf32>
        %cst_34 = arith.constant dense<0.000000e+00> : vector<8xf32>
        %48 = vector.multi_reduction <add>, %47, %cst_34 [1] : vector<8x128xf32> to vector<8xf32>
        %49 = vector.shape_cast %48 : vector<8xf32> to vector<8x1xf32>
        %50 = math.sqrt %49 : vector<8x1xf32>
        %51 = arith.mulf %50, %5 : vector<8x1xf32>
        %c0_35 = arith.constant 0 : index
        %c0_36 = arith.constant 0 : index
        %52 = vector.load %arg10[%c0_35, %c0_36] : memref<8x128xf32, #tpu.memory_space<vmem>>, vector<8x128xf32>
        tpu.vector_store %arg10[%c0_35, %c0_36], %45 {strides = array<i32>} : memref<8x128xf32, #tpu.memory_space<vmem>>, vector<8x128xf32>,
        %c1_i32_37 = arith.constant 1 : i32
        %53 = arith.addi %arg12, %c1_i32_37 : i32
        %54 = vector.broadcast %53 : i32 to vector<8x128xi32>
        %55 = arith.cmpi eq, %3, %54 : vector<8x128xi32>
        %c0_38 = arith.constant 0 : index
        %c0_39 = arith.constant 0 : index
        %56 = vector.load %arg9[%c0_38, %c0_39] : memref<8x128xf32, #tpu.memory_space<vmem>>, vector<8x128xf32>
        %57 = vector.shape_cast %51 : vector<8x1xf32> to vector<8x1xf32>
        %58 = vector.broadcast %57 : vector<8x1xf32> to vector<8x128xf32>
        %59 = arith.select %55, %58, %56 : vector<8x128xi1>, vector<8x128xf32>
        %c0_40 = arith.constant 0 : index
        %c0_41 = arith.constant 0 : index
        %60 = vector.load %arg9[%c0_40, %c0_41] : memref<8x128xf32, #tpu.memory_space<vmem>>, vector<8x128xf32>
        tpu.vector_store %arg9[%c0_40, %c0_41], %59 {strides = array<i32>} : memref<8x128xf32, #tpu.memory_space<vmem>>, vector<8x128xf32>,
        %61 = vector.broadcast %0 : f32 to vector<8x1xf32>
        %62 = arith.cmpf ogt, %51, %61 : vector<8x1xf32>
        %63 = arith.extui %62 : vector<8x1xi1> to vector<8x1xi32>
        %64 = vector.shape_cast %63 : vector<8x1xi32> to vector<1x8x1xi32>
        %cst_42 = arith.constant dense<0> : vector<1xi32>
        %65 = vector.multi_reduction <add>, %64, %cst_42 [1, 2] : vector<1x8x1xi32> to vector<1xi32>
        %66 = vector.shape_cast %65 : vector<1xi32> to vector<1x1x1xi32>
        %67 = vector.extract %66[0, 0, 0] : i32 from vector<1x1x1xi32>
        %c0_43 = arith.constant 0 : index
        %68 = memref.load %arg11[%c0_43] : memref<1xi32, #tpu.memory_space<smem>>
        memref.store %67, %arg11[%c0_43] : memref<1xi32, #tpu.memory_space<smem>>
      } else {
      }
    }
    %c8_i32_18 = arith.constant 8 : i32
    return
  }
}

</mosaic_0001>

<llo_original>
// kernel: tpu_custom_call.1
$region0: #{tpu_custom_call.1}
  #allocation0 [shape = 'u32[]', space=smem, size = 0x4, offset = 0x4, fixed_abs, tag = 'smem constant byte address 0x4 - core index']
  #allocation1 [shape = 'u32[144,128]{1,0:T(1,128)}', space=vmem, size = 0x12000, scoped, tag = 'internal scratch']
  #allocation2 [shape = 'f32[8,128]{1,0:T(8,128)}', space=vmem, size = 0x1000, scoped, tag = 'scratch operand']
  #allocation3 [shape = 's32[1]{0:T(128)}', space=smem, size = 0x200, scoped, tag = 'scratch operand']
  #allocation4 [shape = 'f32[1]{0:T(128)S(6)}', space=smem, size = 0x200, scoped, tag = 'scoped memory for tpu_custom_call.1']
  %s0 = inlined_call_operand.<no memory space> [shape: f32[1], index: 0, kind: input, shape index: {}]
  %s1 = inlined_call_operand.hbm [shape: f32[128,128], index: 1, kind: input, shape index: {}]
  %s2 = inlined_call_operand.vmem [shape: f32[8,128], index: 2, kind: input, shape index: {}]
  %s3 = inlined_call_operand.hbm [shape: f32[128,128], index: 3, kind: input, shape index: {}]
  %s4 = inlined_call_operand.vmem [shape: f32[8,128], index: 4, kind: input, shape index: {}]
  %s5 = inlined_call_operand.hbm [shape: f32[128,128], index: 5, kind: input, shape index: {}]
  %s6 = inlined_call_operand.vmem [shape: f32[8,128], index: 6, kind: input, shape index: {}]
  %s7 = inlined_call_operand.vmem [shape: f32[8,128], index: 7, kind: input, shape index: {}]
  %s8 = inlined_call_operand.vmem [shape: f32[8,1], index: 8, kind: input, shape index: {}]
  %s9 = inlined_call_operand.hbm [shape: f32[8,128], index: 9, kind: output, shape index: {}]
  %s10 = sld [smem:[#allocation0]]
  $region69: #{tpu_custom_call.1} parent=0
    _
  %s12 = ssub.s32 1, %s10
  %s13 = scalar_select 0, %s12, %s10
  %14 = sst [smem:[#allocation4]] %s0
  $region1: #{tpu_custom_call.1} parent=0
    #allocation5 [shape = 'u8[65536]{0}', space=vmem, size = 0x10000, scoped, tag = 'input window, operand 1, single buffered']
    #allocation6 [shape = 's32[1]{0}', space=sflag, size = 0x4, scoped, tag = 'scoped memory for tpu_custom_call.1']
    #allocation7 [shape = 's32[1]{0}', space=sflag, size = 0x4, scoped, tag = 'scoped memory for tpu_custom_call.1']
    #allocation8 [shape = 'u8[65536]{0}', space=vmem, size = 0x10000, scoped, tag = 'input window, operand 3, single buffered']
    #allocation9 [shape = 's32[1]{0}', space=sflag, size = 0x4, scoped, tag = 'scoped memory for tpu_custom_call.1']
    #allocation10 [shape = 'u8[65536]{0}', space=vmem, size = 0x10000, scoped, tag = 'input window, operand 5, single buffered']
    #allocation11 [shape = 'u8[4096]{0}', space=vmem, size = 0x1000, scoped, tag = 'output window, operand 0, single buffered']
    %15 = vsyncpa [#allocation6], 0
    %16 = vsyncpa [#allocation9], 0
    %17 = vsyncpa [#allocation7], 0
    // Predicated region
    $region2: #{tpu_custom_call.1} parent=1 // pred_check
      _
    $region3: #{tpu_custom_call.1} parent=1 // pred_check_branch
      %19 = sbr.rel (0) target = $region5
    $region4: #{tpu_custom_call.1} parent=1 // pred_region
      _
    $region5: #{tpu_custom_call.1} parent=1 // pred_fallthru
      _
    // Predicated region
    $region6: #{tpu_custom_call.1} parent=1 // pred_check
      _
    $region7: #{tpu_custom_call.1} parent=1 // pred_check_branch
      %21 = sbr.rel (0) target = $region9
    $region8: #{tpu_custom_call.1} parent=1 // pred_region
      %s23 = ssub.s32 2048, 2048
      %24 = vsyncadd [#allocation6], %s23
      %s25 = sshll.u32 [#allocation5], 4
      %s26 = int_to_ptr.vmem [resolvable:$true] %s25
      %31 = dma.hbm_to_vmem [thread:$0]  %s1, 2048, %s26, [#allocation6], 128, 128, 8
    $region9: #{tpu_custom_call.1} parent=1 // pred_fallthru
      _
    // Predicated region
    $region10: #{tpu_custom_call.1} parent=1 // pred_check
      _
    $region11: #{tpu_custom_call.1} parent=1 // pred_check_branch
      %33 = sbr.rel (0) target = $region13
    $region12: #{tpu_custom_call.1} parent=1 // pred_region
      _
    $region13: #{tpu_custom_call.1} parent=1 // pred_fallthru
      _
    // Predicated region
    $region14: #{tpu_custom_call.1} parent=1 // pred_check
      _
    $region15: #{tpu_custom_call.1} parent=1 // pred_check_branch
      %35 = sbr.rel (0) target = $region17
    $region16: #{tpu_custom_call.1} parent=1 // pred_region
      %s37 = ssub.s32 2048, 2048
      %38 = vsyncadd [#allocation9], %s37
      %s39 = sshll.u32 [#allocation8], 4
      %s40 = int_to_ptr.vmem [resolvable:$true] %s39
      %45 = dma.hbm_to_vmem [thread:$0]  %s3, 2048, %s40, [#allocation9], 128, 128, 8
    $region17: #{tpu_custom_call.1} parent=1 // pred_fallthru
      _
    // Predicated region
    $region18: #{tpu_custom_call.1} parent=1 // pred_check
      _
    $region19: #{tpu_custom_call.1} parent=1 // pred_check_branch
      %47 = sbr.rel (0) target = $region21
    $region20: #{tpu_custom_call.1} parent=1 // pred_region
      _
    $region21: #{tpu_custom_call.1} parent=1 // pred_fallthru
      _
    // Predicated region
    $region22: #{tpu_custom_call.1} parent=1 // pred_check
      _
    $region23: #{tpu_custom_call.1} parent=1 // pred_check_branch
      %49 = sbr.rel (0) target = $region25
    $region24: #{tpu_custom_call.1} parent=1 // pred_region
      %s51 = ssub.s32 2048, 2048
      %52 = vsyncadd [#allocation9], %s51
      %s53 = sshll.u32 [#allocation10], 4
      %s54 = int_to_ptr.vmem [resolvable:$true] %s53
      %59 = dma.hbm_to_vmem [thread:$0]  %s5, 2048, %s54, [#allocation9], 128, 128, 8
    $region25: #{tpu_custom_call.1} parent=1 // pred_fallthru
      _
    // Predicated region
    $region26: #{tpu_custom_call.1} parent=1 // pred_check
      _
    $region27: #{tpu_custom_call.1} parent=1 // pred_check_branch
      %61 = sbr.rel (0) target = $region29
    $region28: #{tpu_custom_call.1} parent=1 // pred_region
      _
    $region29: #{tpu_custom_call.1} parent=1 // pred_fallthru
      _
    // Predicated region
    $region30: #{tpu_custom_call.1} parent=1 // pred_check
      _
    $region31: #{tpu_custom_call.1} parent=1 // pred_check_branch
      %63 = sbr.rel (0) target = $region33
    $region32: #{tpu_custom_call.1} parent=1 // pred_region
      _
    $region33: #{tpu_custom_call.1} parent=1 // pred_fallthru
      _
    // Predicated region
    $region34: #{tpu_custom_call.1} parent=1 // pred_check
      _
    $region35: #{tpu_custom_call.1} parent=1 // pred_check_branch
      %65 = sbr.rel (0) target = $region37
    $region36: #{tpu_custom_call.1} parent=1 // pred_region
      _
    $region37: #{tpu_custom_call.1} parent=1 // pred_fallthru
      _
    // Predicated region
    $region38: #{tpu_custom_call.1} parent=1 // pred_check
      _
    $region39: #{tpu_custom_call.1} parent=1 // pred_check_branch
      %67 = sbr.rel (0) target = $region41
    $region40: #{tpu_custom_call.1} parent=1 // pred_region
      %68 = dma.done [#allocation6], 2048
    $region41: #{tpu_custom_call.1} parent=1 // pred_fallthru
      _
    // Predicated region
    $region42: #{tpu_custom_call.1} parent=1 // pred_check
      _
    $region43: #{tpu_custom_call.1} parent=1 // pred_check_branch
      %70 = sbr.rel (0) target = $region45
    $region44: #{tpu_custom_call.1} parent=1 // pred_region
      %71 = dma.done [#allocation9], 2048
    $region45: #{tpu_custom_call.1} parent=1 // pred_fallthru
      _
    // Predicated region
    $region46: #{tpu_custom_call.1} parent=1 // pred_check
      _
    $region47: #{tpu_custom_call.1} parent=1 // pred_check_branch
      %73 = sbr.rel (0) target = $region49
    $region48: #{tpu_custom_call.1} parent=1 // pred_region
      %74 = dma.done [#allocation9], 2048
    $region49: #{tpu_custom_call.1} parent=1 // pred_fallthru
      _
    %s75 = sld [smem:[#allocation4]]
    %v76 = vld [vmem:[#allocation5] sm:$0xff]
    %v77 = vld [vmem:[#allocation5 + $0x8] sm:$0xff]
    %v78 = vld [vmem:[#allocation5 + $0x10] sm:$0xff]
    %v79 = vld [vmem:[#allocation5 + $0x18] sm:$0xff]
    %v80 = vld [vmem:[#allocation5 + $0x20] sm:$0xff]
    %v81 = vld [vmem:[#allocation5 + $0x28] sm:$0xff]
    %v82 = vld [vmem:[#allocation5 + $0x30] sm:$0xff]
    %v83 = vld [vmem:[#allocation5 + $0x38] sm:$0xff]
    %v84 = vld [vmem:[#allocation5 + $0x40] sm:$0xff]
    %v85 = vld [vmem:[#allocation5 + $0x48] sm:$0xff]
    %v86 = vld [vmem:[#allocation5 + $0x50] sm:$0xff]
    %v87 = vld [vmem:[#allocation5 + $0x58] sm:$0xff]
    %v88 = vld [vmem:[#allocation5 + $0x60] sm:$0xff]
    %v89 = vld [vmem:[#allocation5 + $0x68] sm:$0xff]
    %v90 = vld [vmem:[#allocation5 + $0x70] sm:$0xff]
    %v91 = vld [vmem:[#allocation5 + $0x78] sm:$0xff]
    %v92 = vld [vmem:[%s2] sm:$0xff]
    %v93 = vlaneseq
    %v94 = vand.u32 %v93, 127
    %v95 = vld [vmem:[%s7] sm:$0xff]
    %v96 = vld [vmem:[%s8] sm:$0xff]
    %v97 = vld [vmem:[%s6] sm:$0xff]
    %98 = vst [vmem:[#allocation2] sm:$0xff] %v97
    %v99 = vsub.f32 %v95, %v97
    %v100 = vmul.f32 %v99, %v99
    %101 = vadd.xlane.f32.xlu0 %v100
    %v102 = vpop.xlane.xlu0 %101
    %v103 = vrsqrt.pop %v102
    %v104 = vmul.f32 %v102, %v103
    %vm105 = vcmp.eq.f32.partialorder %v102, inf
    %v106 = vsel %vm105, %v102, %v104
    %vm107 = vcmp.eq.f32.partialorder %v102, 0.0
    %v108 = vand.u32 %v102, 2147483648
    %v109 = vsel %vm107, %v108, %v106
    %v110 = vmul.f32 %v109, %v96
    %vm111 = vcmp.eq.s32.totalorder %v94, 0
    %113 = vset.pattern.permute.xlu0 0
    %114 = vperm.xlu0 %113, %v110
    %v115 = vpop.permute.xlu0 %114
    %v117 = vsel %vm111, %v115, 0.0
    %118 = vst [vmem:[#allocation11] sm:$0xff] %v117
    %v119 = vstv %s75
    %vm120 = vcmp.gt.f32.partialorder %v110, %v119
    %v121 = vsel %vm120, 1, 0
    %vm122 = vcmask 7168
    %v123 = vsel %vm122, %v121, 0
    %v124 = vand.u32 %v123, 65535
    %v125 = vshrl.u32 %v123, 16
    %v126 = vcvt.s32.f32 %v124
    %v127 = vcvt.s32.f32 %v125
    %128 = vadd.xlane.f32.xlu0 %v126
    %v129 = vpop.xlane.xlu0 %128
    %130 = vadd.xlane.f32.xlu0 %v127
    %v131 = vpop.xlane.xlu0 %130
    %v132 = vcvt.f32.s32 %v129
    %v133 = vcvt.f32.s32 %v131
    %v134 = vshll.u32 %v133, 16
    %v135 = vadd.s32 %v134, %v132
    %v136 = vrot.slane %v135, 4
    %v137 = vadd.s32 %v135, %v136
    %v138 = vrot.slane %v137, 2
    %v139 = vadd.s32 %v137, %v138
    %v140 = vrot.slane %v139, 1
    %v141 = vadd.s32 %v139, %v140
    %s142 = vtos %v141
    %s143 = scalar_lea.smem [#allocation3], 0
    %144 = sst [smem:[%s143]] %s142
    loop: start=0, step=1, limit=8
    $region50: #{tpu_custom_call.1} parent=1 // loop_pre_header
      _
    $region51: #{tpu_custom_call.1} parent=1 // loop_header
      %s146 = sphi 0, %s150
      %p147 = scmp.ge.s32.totalorder %s146, 8
    $region52: #{tpu_custom_call.1} parent=1 // loop_header_branch
      %149 = sbr.rel (%p147) target = $region56
    $region53: #{tpu_custom_call.1} parent=1 // loop_body
      %s151 = sld [smem:[#allocation3]]
      %p152 = scmp.gt.s32.totalorder %s151, 0
      // Predicated region
      $region57: #{tpu_custom_call.1} parent=53 // pred_check
        %p153 = pneg %p152
      $region58: #{tpu_custom_call.1} parent=53 // pred_check_branch
        %155 = sbr.rel (%p153) target = $region60
      $region59: #{tpu_custom_call.1} parent=53 // pred_region
        %v156 = vld [vmem:[#allocation2] sm:$0xff]
        %157 = vmatprep.subr.mxu0 0.0
        %158 = vmatpush1.msra.mxu0 %v76
        %159 = vmatprep.subr.mxu0 0.0
        %160 = vmatpush1.msra.mxu0 %v77
        %161 = vmatprep.subr.mxu0 0.0
        %162 = vmatpush1.msra.mxu0 %v78
        %163 = vmatprep.subr.mxu0 0.0
        %164 = vmatpush1.msra.mxu0 %v79
        %165 = vmatprep.subr.mxu0 0.0
        %166 = vmatpush1.msra.mxu0 %v80
        %167 = vmatprep.subr.mxu0 0.0
        %168 = vmatpush1.msra.mxu0 %v81
        %169 = vmatprep.subr.mxu0 0.0
        %170 = vmatpush1.msra.mxu0 %v82
        %171 = vmatprep.subr.mxu0 0.0
        %172 = vmatpush1.msra.mxu0 %v83
        %173 = vmatprep.subr.mxu0 0.0
        %174 = vmatpush1.msra.mxu0 %v84
        %175 = vmatprep.subr.mxu0 0.0
        %176 = vmatpush1.msra.mxu0 %v85
        %177 = vmatprep.subr.mxu0 0.0
        %178 = vmatpush1.msra.mxu0 %v86
        %179 = vmatprep.subr.mxu0 0.0
        %180 = vmatpush1.msra.mxu0 %v87
        %181 = vmatprep.subr.mxu0 0.0
        %182 = vmatpush1.msra.mxu0 %v88
        %183 = vmatprep.subr.mxu0 0.0
        %184 = vmatpush1.msra.mxu0 %v89
        %185 = vmatprep.subr.mxu0 0.0
        %186 = vmatpush1.msra.mxu0 %v90
        %187 = vmatprep.subr.mxu0 0.0
        %188 = vmatpush1.msra.mxu0 %v91
        %189 = vmatprep.subr.mxu0 0.0
        %190 = vmatpush1.msra.mxu0 0.0
        %191 = vmatprep.subr.mxu0 0.0
        %192 = vmatpush1.msra.mxu0 0.0
        %193 = vmatprep.subr.mxu0 0.0
        %194 = vmatpush1.msra.mxu0 0.0
        %195 = vmatprep.subr.mxu0 0.0
        %196 = vmatpush1.msra.mxu0 0.0
        %197 = vmatprep.subr.mxu0 0.0
        %198 = vmatpush1.msra.mxu0 0.0
        %199 = vmatprep.subr.mxu0 0.0
        %200 = vmatpush1.msra.mxu0 0.0
        %201 = vmatprep.subr.mxu0 0.0
        %202 = vmatpush1.msra.mxu0 0.0
        %203 = vmatprep.subr.mxu0 0.0
        %204 = vmatpush1.msra.mxu0 0.0
        %205 = vmatprep.subr.mxu0 0.0
        %206 = vmatpush1.msra.mxu0 0.0
        %207 = vmatprep.subr.mxu0 0.0
        %208 = vmatpush1.msra.mxu0 0.0
        %209 = vmatprep.subr.mxu0 0.0
        %210 = vmatpush1.msra.mxu0 0.0
        %211 = vmatprep.subr.mxu0 0.0
        %212 = vmatpush1.msra.mxu0 0.0
        %213 = vmatprep.subr.mxu0 0.0
        %214 = vmatpush1.msra.mxu0 0.0
        %215 = vmatprep.subr.mxu0 0.0
        %216 = vmatpush1.msra.mxu0 0.0
        %217 = vmatprep.subr.mxu0 0.0
        %218 = vmatpush1.msra.mxu0 0.0
        %219 = vmatprep.subr.mxu0 0.0
        %220 = vmatpush1.msra.mxu0 0.0
        %221 = vmatprep.mubr.f32.mxu0 0.0
        %222 = vmatmul.mubr.f32.gmra.mrb[0].mxu0 %v156
        %v223 = vpop.f32.mrb[0].mxu0
        %v224 = vadd.f32 %v92, %v223
        %v225 = vpop.f32.mrb[0].mxu0
        %226 = vdwg.mxu0
        %v227 = vld [vmem:[%s4] sm:$0xff]
        %v228 = vld [vmem:[#allocation8] sm:$0xff]
        %v229 = vld [vmem:[#allocation8 + $0x8] sm:$0xff]
        %v230 = vld [vmem:[#allocation8 + $0x10] sm:$0xff]
        %v231 = vld [vmem:[#allocation8 + $0x18] sm:$0xff]
        %v232 = vld [vmem:[#allocation8 + $0x20] sm:$0xff]
        %v233 = vld [vmem:[#allocation8 + $0x28] sm:$0xff]
        %v234 = vld [vmem:[#allocation8 + $0x30] sm:$0xff]
        %v235 = vld [vmem:[#allocation8 + $0x38] sm:$0xff]
        %v236 = vld [vmem:[#allocation8 + $0x40] sm:$0xff]
        %v237 = vld [vmem:[#allocation8 + $0x48] sm:$0xff]
        %v238 = vld [vmem:[#allocation8 + $0x50] sm:$0xff]
        %v239 = vld [vmem:[#allocation8 + $0x58] sm:$0xff]
        %v240 = vld [vmem:[#allocation8 + $0x60] sm:$0xff]
        %v241 = vld [vmem:[#allocation8 + $0x68] sm:$0xff]
        %v242 = vld [vmem:[#allocation8 + $0x70] sm:$0xff]
        %v243 = vld [vmem:[#allocation8 + $0x78] sm:$0xff]
        %244 = vmatprep.subr.mxu0 0.0
        %245 = vmatpush1.msra.mxu0 %v228
        %246 = vmatprep.subr.mxu0 0.0
        %247 = vmatpush1.msra.mxu0 %v229
        %248 = vmatprep.subr.mxu0 0.0
        %249 = vmatpush1.msra.mxu0 %v230
        %250 = vmatprep.subr.mxu0 0.0
        %251 = vmatpush1.msra.mxu0 %v231
        %252 = vmatprep.subr.mxu0 0.0
        %253 = vmatpush1.msra.mxu0 %v232
        %254 = vmatprep.subr.mxu0 0.0
        %255 = vmatpush1.msra.mxu0 %v233
        %256 = vmatprep.subr.mxu0 0.0
        %257 = vmatpush1.msra.mxu0 %v234
        %258 = vmatprep.subr.mxu0 0.0
        %259 = vmatpush1.msra.mxu0 %v235
        %260 = vmatprep.subr.mxu0 0.0
        %261 = vmatpush1.msra.mxu0 %v236
        %262 = vmatprep.subr.mxu0 0.0
        %263 = vmatpush1.msra.mxu0 %v237
        %264 = vmatprep.subr.mxu0 0.0
        %265 = vmatpush1.msra.mxu0 %v238
        %266 = vmatprep.subr.mxu0 0.0
        %267 = vmatpush1.msra.mxu0 %v239
        %268 = vmatprep.subr.mxu0 0.0
        %269 = vmatpush1.msra.mxu0 %v240
        %270 = vmatprep.subr.mxu0 0.0
        %271 = vmatpush1.msra.mxu0 %v241
        %272 = vmatprep.subr.mxu0 0.0
        %273 = vmatpush1.msra.mxu0 %v242
        %274 = vmatprep.subr.mxu0 0.0
        %275 = vmatpush1.msra.mxu0 %v243
        %276 = vmatprep.subr.mxu0 0.0
        %277 = vmatpush1.msra.mxu0 0.0
        %278 = vmatprep.subr.mxu0 0.0
        %279 = vmatpush1.msra.mxu0 0.0
        %280 = vmatprep.subr.mxu0 0.0
        %281 = vmatpush1.msra.mxu0 0.0
        %282 = vmatprep.subr.mxu0 0.0
        %283 = vmatpush1.msra.mxu0 0.0
        %284 = vmatprep.subr.mxu0 0.0
        %285 = vmatpush1.msra.mxu0 0.0
        %286 = vmatprep.subr.mxu0 0.0
        %287 = vmatpush1.msra.mxu0 0.0
        %288 = vmatprep.subr.mxu0 0.0
        %289 = vmatpush1.msra.mxu0 0.0
        %290 = vmatprep.subr.mxu0 0.0
        %291 = vmatpush1.msra.mxu0 0.0
        %292 = vmatprep.subr.mxu0 0.0
        %293 = vmatpush1.msra.mxu0 0.0
        %294 = vmatprep.subr.mxu0 0.0
        %295 = vmatpush1.msra.mxu0 0.0
        %296 = vmatprep.subr.mxu0 0.0
        %297 = vmatpush1.msra.mxu0 0.0
        %298 = vmatprep.subr.mxu0 0.0
        %299 = vmatpush1.msra.mxu0 0.0
        %300 = vmatprep.subr.mxu0 0.0
        %301 = vmatpush1.msra.mxu0 0.0
        %302 = vmatprep.subr.mxu0 0.0
        %303 = vmatpush1.msra.mxu0 0.0
        %304 = vmatprep.subr.mxu0 0.0
        %305 = vmatpush1.msra.mxu0 0.0
        %306 = vmatprep.subr.mxu0 0.0
        %307 = vmatpush1.msra.mxu0 0.0
        %308 = vmatprep.mubr.f32.mxu0 0.0
        %309 = vmatmul.mubr.f32.gmra.mrb[0].mxu0 %v224
        %v310 = vpop.f32.mrb[0].mxu0
        %v311 = vadd.f32 0.0, %v310
        %v312 = vpop.f32.mrb[0].mxu0
        %313 = vdwg.mxu0
        %v314 = vsub.f32 %v227, %v311
        %v315 = vld [vmem:[#allocation10] sm:$0xff]
        %v316 = vld [vmem:[#allocation10 + $0x8] sm:$0xff]
        %v317 = vld [vmem:[#allocation10 + $0x10] sm:$0xff]
        %v318 = vld [vmem:[#allocation10 + $0x18] sm:$0xff]
        %v319 = vld [vmem:[#allocation10 + $0x20] sm:$0xff]
        %v320 = vld [vmem:[#allocation10 + $0x28] sm:$0xff]
        %v321 = vld [vmem:[#allocation10 + $0x30] sm:$0xff]
        %v322 = vld [vmem:[#allocation10 + $0x38] sm:$0xff]
        %v323 = vld [vmem:[#allocation10 + $0x40] sm:$0xff]
        %v324 = vld [vmem:[#allocation10 + $0x48] sm:$0xff]
        %v325 = vld [vmem:[#allocation10 + $0x50] sm:$0xff]
        %v326 = vld [vmem:[#allocation10 + $0x58] sm:$0xff]
        %v327 = vld [vmem:[#allocation10 + $0x60] sm:$0xff]
        %v328 = vld [vmem:[#allocation10 + $0x68] sm:$0xff]
        %v329 = vld [vmem:[#allocation10 + $0x70] sm:$0xff]
        %v330 = vld [vmem:[#allocation10 + $0x78] sm:$0xff]
        %331 = vmatprep.subr.mxu0 0.0
        %332 = vmatpush1.msra.mxu0 %v315
        %333 = vmatprep.subr.mxu0 0.0
        %334 = vmatpush1.msra.mxu0 %v316
        %335 = vmatprep.subr.mxu0 0.0
        %336 = vmatpush1.msra.mxu0 %v317
        %337 = vmatprep.subr.mxu0 0.0
        %338 = vmatpush1.msra.mxu0 %v318
        %339 = vmatprep.subr.mxu0 0.0
        %340 = vmatpush1.msra.mxu0 %v319
        %341 = vmatprep.subr.mxu0 0.0
        %342 = vmatpush1.msra.mxu0 %v320
        %343 = vmatprep.subr.mxu0 0.0
        %344 = vmatpush1.msra.mxu0 %v321
        %345 = vmatprep.subr.mxu0 0.0
        %346 = vmatpush1.msra.mxu0 %v322
        %347 = vmatprep.subr.mxu0 0.0
        %348 = vmatpush1.msra.mxu0 %v323
        %349 = vmatprep.subr.mxu0 0.0
        %350 = vmatpush1.msra.mxu0 %v324
        %351 = vmatprep.subr.mxu0 0.0
        %352 = vmatpush1.msra.mxu0 %v325
        %353 = vmatprep.subr.mxu0 0.0
        %354 = vmatpush1.msra.mxu0 %v326
        %355 = vmatprep.subr.mxu0 0.0
        %356 = vmatpush1.msra.mxu0 %v327
        %357 = vmatprep.subr.mxu0 0.0
        %358 = vmatpush1.msra.mxu0 %v328
        %359 = vmatprep.subr.mxu0 0.0
        %360 = vmatpush1.msra.mxu0 %v329
        %361 = vmatprep.subr.mxu0 0.0
        %362 = vmatpush1.msra.mxu0 %v330
        %363 = vmatprep.subr.mxu0 0.0
        %364 = vmatpush1.msra.mxu0 0.0
        %365 = vmatprep.subr.mxu0 0.0
        %366 = vmatpush1.msra.mxu0 0.0
        %367 = vmatprep.subr.mxu0 0.0
        %368 = vmatpush1.msra.mxu0 0.0
        %369 = vmatprep.subr.mxu0 0.0
        %370 = vmatpush1.msra.mxu0 0.0
        %371 = vmatprep.subr.mxu0 0.0
        %372 = vmatpush1.msra.mxu0 0.0
        %373 = vmatprep.subr.mxu0 0.0
        %374 = vmatpush1.msra.mxu0 0.0
        %375 = vmatprep.subr.mxu0 0.0
        %376 = vmatpush1.msra.mxu0 0.0
        %377 = vmatprep.subr.mxu0 0.0
        %378 = vmatpush1.msra.mxu0 0.0
        %379 = vmatprep.subr.mxu0 0.0
        %380 = vmatpush1.msra.mxu0 0.0
        %381 = vmatprep.subr.mxu0 0.0
        %382 = vmatpush1.msra.mxu0 0.0
        %383 = vmatprep.subr.mxu0 0.0
        %384 = vmatpush1.msra.mxu0 0.0
        %385 = vmatprep.subr.mxu0 0.0
        %386 = vmatpush1.msra.mxu0 0.0
        %387 = vmatprep.subr.mxu0 0.0
        %388 = vmatpush1.msra.mxu0 0.0
        %389 = vmatprep.subr.mxu0 0.0
        %390 = vmatpush1.msra.mxu0 0.0
        %391 = vmatprep.subr.mxu0 0.0
        %392 = vmatpush1.msra.mxu0 0.0
        %393 = vmatprep.subr.mxu0 0.0
        %394 = vmatpush1.msra.mxu0 0.0
        %395 = vmatprep.mubr.f32.mxu0 0.0
        %396 = vmatmul.mubr.f32.gmra.mrb[0].mxu0 %v314
        %v397 = vpop.f32.mrb[0].mxu0
        %v398 = vadd.f32 0.0, %v397
        %v399 = vpop.f32.mrb[0].mxu0
        %400 = vdwg.mxu0
        %v401 = vadd.f32 %v224, %v398
        %402 = vmatprep.subr.mxu0 0.0
        %403 = vmatpush1.msra.mxu0 %v76
        %404 = vmatprep.subr.mxu0 0.0
        %405 = vmatpush1.msra.mxu0 %v77
        %406 = vmatprep.subr.mxu0 0.0
        %407 = vmatpush1.msra.mxu0 %v78
        %408 = vmatprep.subr.mxu0 0.0
        %409 = vmatpush1.msra.mxu0 %v79
        %410 = vmatprep.subr.mxu0 0.0
        %411 = vmatpush1.msra.mxu0 %v80
        %412 = vmatprep.subr.mxu0 0.0
        %413 = vmatpush1.msra.mxu0 %v81
        %414 = vmatprep.subr.mxu0 0.0
        %415 = vmatpush1.msra.mxu0 %v82
        %416 = vmatprep.subr.mxu0 0.0
        %417 = vmatpush1.msra.mxu0 %v83
        %418 = vmatprep.subr.mxu0 0.0
        %419 = vmatpush1.msra.mxu0 %v84
        %420 = vmatprep.subr.mxu0 0.0
        %421 = vmatpush1.msra.mxu0 %v85
        %422 = vmatprep.subr.mxu0 0.0
        %423 = vmatpush1.msra.mxu0 %v86
        %424 = vmatprep.subr.mxu0 0.0
        %425 = vmatpush1.msra.mxu0 %v87
        %426 = vmatprep.subr.mxu0 0.0
        %427 = vmatpush1.msra.mxu0 %v88
        %428 = vmatprep.subr.mxu0 0.0
        %429 = vmatpush1.msra.mxu0 %v89
        %430 = vmatprep.subr.mxu0 0.0
        %431 = vmatpush1.msra.mxu0 %v90
        %432 = vmatprep.subr.mxu0 0.0
        %433 = vmatpush1.msra.mxu0 %v91
        %434 = vmatprep.subr.mxu0 0.0
        %435 = vmatpush1.msra.mxu0 0.0
        %436 = vmatprep.subr.mxu0 0.0
        %437 = vmatpush1.msra.mxu0 0.0
        %438 = vmatprep.subr.mxu0 0.0
        %439 = vmatpush1.msra.mxu0 0.0
        %440 = vmatprep.subr.mxu0 0.0
        %441 = vmatpush1.msra.mxu0 0.0
        %442 = vmatprep.subr.mxu0 0.0
        %443 = vmatpush1.msra.mxu0 0.0
        %444 = vmatprep.subr.mxu0 0.0
        %445 = vmatpush1.msra.mxu0 0.0
        %446 = vmatprep.subr.mxu0 0.0
        %447 = vmatpush1.msra.mxu0 0.0
        %448 = vmatprep.subr.mxu0 0.0
        %449 = vmatpush1.msra.mxu0 0.0
        %450 = vmatprep.subr.mxu0 0.0
        %451 = vmatpush1.msra.mxu0 0.0
        %452 = vmatprep.subr.mxu0 0.0
        %453 = vmatpush1.msra.mxu0 0.0
        %454 = vmatprep.subr.mxu0 0.0
        %455 = vmatpush1.msra.mxu0 0.0
        %456 = vmatprep.subr.mxu0 0.0
        %457 = vmatpush1.msra.mxu0 0.0
        %458 = vmatprep.subr.mxu0 0.0
        %459 = vmatpush1.msra.mxu0 0.0
        %460 = vmatprep.subr.mxu0 0.0
        %461 = vmatpush1.msra.mxu0 0.0
        %462 = vmatprep.subr.mxu0 0.0
        %463 = vmatpush1.msra.mxu0 0.0
        %464 = vmatprep.subr.mxu0 0.0
        %465 = vmatpush1.msra.mxu0 0.0
        %466 = vmatprep.mubr.f32.mxu0 0.0
        %467 = vmatmul.mubr.f32.gmra.mrb[0].mxu0 %v401
        %v468 = vpop.f32.mrb[0].mxu0
        %v469 = vadd.f32 %v92, %v468
        %v470 = vpop.f32.mrb[0].mxu0
        %471 = vdwg.mxu0
        %v472 = vsub.f32 %v95, %v469
        %v473 = vmul.f32 %v472, %v472
        %474 = vadd.xlane.f32.xlu0 %v473
        %v475 = vpop.xlane.xlu0 %474
        %v476 = vrsqrt.pop %v475
        %v477 = vmul.f32 %v475, %v476
        %vm478 = vcmp.eq.f32.partialorder %v475, inf
        %v479 = vsel %vm478, %v475, %v477
        %vm480 = vcmp.eq.f32.partialorder %v475, 0.0
        %v481 = vand.u32 %v475, 2147483648
        %v482 = vsel %vm480, %v481, %v479
        %v483 = vmul.f32 %v482, %v96
        %484 = vst [vmem:[#allocation2] sm:$0xff] %v469
        %s485 = sadd.s32 %s146, 1
        %v486 = vstv %s485
        %vm487 = vcmp.eq.s32.totalorder %v94, %v486
        %v488 = vld [vmem:[#allocation11] sm:$0xff]
        %490 = vset.pattern.permute.xlu0 0
        %491 = vperm.xlu0 %490, %v483
        %v492 = vpop.permute.xlu0 %491
        %v494 = vsel %vm487, %v492, %v488
        %495 = vst [vmem:[#allocation11] sm:$0xff] %v494
        %vm496 = vcmp.gt.f32.partialorder %v483, %v119
        %v497 = vsel %vm496, 1, 0
        %v498 = vsel %vm122, %v497, 0
        %v499 = vand.u32 %v498, 65535
        %v500 = vshrl.u32 %v498, 16
        %v501 = vcvt.s32.f32 %v499
        %v502 = vcvt.s32.f32 %v500
        %503 = vadd.xlane.f32.xlu0 %v501
        %v504 = vpop.xlane.xlu0 %503
        %505 = vadd.xlane.f32.xlu0 %v502
        %v506 = vpop.xlane.xlu0 %505
        %v507 = vcvt.f32.s32 %v504
        %v508 = vcvt.f32.s32 %v506
        %v509 = vshll.u32 %v508, 16
        %v510 = vadd.s32 %v509, %v507
        %v511 = vrot.slane %v510, 4
        %v512 = vadd.s32 %v510, %v511
        %v513 = vrot.slane %v512, 2
        %v514 = vadd.s32 %v512, %v513
        %v515 = vrot.slane %v514, 1
        %v516 = vadd.s32 %v514, %v515
        %s517 = vtos %v516
        %518 = sst [smem:[%s143]] %s517
      $region60: #{tpu_custom_call.1} parent=53 // pred_fallthru
        _
    $region54: #{tpu_custom_call.1} parent=1 // loop_footer
      %s150 = sadd.s32 1, %s146
    $region55: #{tpu_custom_call.1} parent=1 // loop_footer_branch
      %145 = sbr.rel target = $region51
    $region56: #{tpu_custom_call.1} parent=1 // loop_exit
      _
    // Predicated region
    $region61: #{tpu_custom_call.1} parent=1 // pred_check
      _
    $region62: #{tpu_custom_call.1} parent=1 // pred_check_branch
      %520 = sbr.rel (0) target = $region64
    $region63: #{tpu_custom_call.1} parent=1 // pred_region
      %s522 = ssub.s32 128, 128
      %523 = vsyncadd [#allocation7], %s522
      %s525 = sshll.u32 [#allocation11], 4
      %s526 = int_to_ptr.vmem [resolvable:$true] %s525
      %528 = dma.vmem_to_hbm [thread:$0]  %s526, 128, %s9, [#allocation7]
    $region64: #{tpu_custom_call.1} parent=1 // pred_fallthru
      _
    // Predicated region
    $region65: #{tpu_custom_call.1} parent=1 // pred_check
      _
    $region66: #{tpu_custom_call.1} parent=1 // pred_check_branch
      %530 = sbr.rel (0) target = $region68
    $region67: #{tpu_custom_call.1} parent=1 // pred_region
      %531 = dma.done [#allocation7], 128
    $region68: #{tpu_custom_call.1} parent=1 // pred_fallthru
      _
    %532 = vsyncpa [#allocation6], 1
    %533 = vsyncpa [#allocation9], 1
    %534 = vsyncpa [#allocation7], 1

</llo_original>
